<compile_context>
chip_gen: v7x
topology: tpu7x:2x2x1
jax: 0.10.0
libtpu: 0.0.40
codegen_flags: <defaults>
</compile_context>

<pallas_src>
import functools

import jax
import jax.numpy as jnp
from jax import lax
from jax.experimental import pallas as pl
from jax.experimental.pallas import tpu as pltpu

_LANE = 128


def _vmem_limit_bytes():
    cap = 64 * 1024 * 1024
    try:
        cap = int(getattr(pltpu.get_tpu_info(), "vmem_capacity_bytes", cap))
    except Exception:
        pass
    # ~3/4 of physical, capped: v5e/v6e (128 MiB) -> 96 MiB, v7x (64 MiB) -> 48 MiB.
    return int(min(cap * 3 // 4, 96 * 1024 * 1024))


# ------------------------------- small helpers -------------------------------- #

def _ceil_to(x, m):
    return ((x + m - 1) // m) * m


def _pad_last(a, n):
    p = n - a.shape[-1]
    return a if p == 0 else jnp.pad(a, [(0, 0)] * (a.ndim - 1) + [(0, p)])


def _pad_2d(a, rows, cols):
    return jnp.pad(a, ((0, rows - a.shape[0]), (0, cols - a.shape[1])))


def _rb(v, n):
    return _pad_last(jnp.reshape(v, (1, -1)).astype(jnp.float32), n)


def fold_bn(p, eps=1e-5):
    scale = p["gamma"] / jnp.sqrt(p["var"] + eps)
    bias = p["beta"] - p["mean"] * scale
    return scale, bias


# ------------------------------- in-kernel ops -------------------------------- #

def _silu(y, approx):
    # y is f32; exp + reciprocal both run on the EUP slot (no VALU divide).
    return y * pl.reciprocal(1.0 + jnp.exp(-y), approx=approx)


def _stem_kernel(x_ref, w_ref, s_ref, b_ref, o1_ref, o2_ref, *, c_pad, approx):
    # Fused C3.cbs1 + C3.cbs2: one matmul against [w1|w2], split in the epilogue.
    y = jnp.dot(x_ref[...], w_ref[...], preferred_element_type=jnp.float32)
    y = _silu(y * s_ref[...] + b_ref[...], approx)
    o1_ref[...] = y[:, :c_pad].astype(o1_ref.dtype)
    o2_ref[...] = y[:, c_pad:].astype(o2_ref.dtype)


def _tail_kernel(h_ref, y_ref, wa_ref, wb_ref, s_ref, b_ref, o_ref, *, approx):
    # Fused channel-concat + C3.cbs3: two accumulated matmuls against split weight.
    acc = jnp.dot(h_ref[...], wa_ref[...], preferred_element_type=jnp.float32)
    acc = acc + jnp.dot(y_ref[...], wb_ref[...], preferred_element_type=jnp.float32)
    o_ref[...] = _silu(acc * s_ref[...] + b_ref[...], approx).astype(o_ref.dtype)


def _resunit_kernel(xp_ref, xm_ref, xn_ref, w1_ref, s1_ref, b1_ref,
                    w2_ref, s2_ref, b2_ref, o_ref,
                    *, tile_h, W, n_ht, add, approx):
    # Fused ResUnit: 1x1 CBS -> 3x3 CBS (halo tiling, no HBM im2col) -> residual.
    rows_mid = tile_h * W
    rows_strip = rows_mid + 2 * W
    it = pl.program_id(0) % n_ht                 # H-tile index within its image

    # 1x1 CBS on the tile plus one halo image-row per side, as a single matmul.
    x_strip = jnp.concatenate([xp_ref[...], xm_ref[...], xn_ref[...]], axis=0)
    t = jnp.dot(x_strip, w1_ref[...], preferred_element_type=jnp.float32)
    t = _silu(t * s1_ref[...] + b1_ref[...], approx)

    ridx = lax.broadcasted_iota(jnp.int32, (rows_strip, 1), 0)
    col = ridx % W                               # W-column of each strip row
    # halo rows outside the image act as the 3x3 conv's zero padding along H
    valid = (((ridx >= W) | (it > 0)) &
             ((ridx < W + rows_mid) | (it < n_ht - 1))).astype(jnp.float32)
    t = t * valid

    # dw = +-1 taps: one pre-masked XLU roll each; every tap slice below is then a
    # full-lane view starting at an 8-aligned sublane offset (W % 8 == 0).
    lmask = (col > 0).astype(jnp.float32)        # tap column w-1 in bounds
    rmask = (col < W - 1).astype(jnp.float32)    # tap column w+1 in bounds
    t_m1 = pltpu.roll(t, 1, axis=0) * lmask
    t_p1 = pltpu.roll(t, rows_strip - 1, axis=0) * rmask

    cdt = w2_ref.dtype
    taps = (t_m1.astype(cdt), t.astype(cdt), t_p1.astype(cdt))

    acc = None
    for kh in range(3):                          # 3x3 conv = 9 accumulated matmuls
        for kw in range(3):
            tap = taps[kw][kh * W:kh * W + rows_mid, :]
            d = jnp.dot(tap, w2_ref[kh * 3 + kw], preferred_element_type=jnp.float32)
            acc = d if acc is None else acc + d

    y = _silu(acc * s2_ref[...] + b2_ref[...], approx)
    if add:                                      # residual (static flag)
        y = y + xm_ref[...].astype(jnp.float32)
    o_ref[...] = y.astype(o_ref.dtype)


# ------------------------------- tile pickers --------------------------------- #

def _pick_tile_m(M, bytes_per_row, budget):
    cands = [t for t in (8192, 4096, 2048, 1024, 512, 256, 128, 64, 32, 16, 8)
             if t <= M and M % t == 0]
    if not cands:
        return M
    fit = [t for t in cands if 2 * t * bytes_per_row <= budget] or [cands[-1]]
    for t in fit:                                # prefer >=2 steps (v7x has 2 TCs)
        if M // t >= 2:
            return t
    return fit[0]


def _pick_tile_h(H, W, N, bytes_per_row, budget):
    cands = [t for t in (64, 32, 16, 8, 4, 2, 1)
             if t <= H and H % t == 0 and (t * W) % 8 == 0]
    if not cands:
        return H
    fit = [t for t in cands if 2 * (t + 2) * W * bytes_per_row <= budget] or [cands[-1]]
    for t in fit:                                # prefer >=2 steps (v7x has 2 TCs)
        if N * (H // t) >= 2:
            return t
    return fit[0]


# ------------------------------ kernel wrappers -------------------------------- #

def stem_call(x2d, w, s, b, c_pad, act_dtype, approx, vmem_limit):
    M, cin_pad = x2d.shape
    bs = jnp.dtype(act_dtype).itemsize
    bpr = (cin_pad + 2 * c_pad) * bs + 2 * c_pad * 4
    tm = _pick_tile_m(M, bpr, vmem_limit // 2)
    row = lambda i: (i, 0)
    rep = lambda i: (0, 0)
    return pl.pallas_call(
        functools.partial(_stem_kernel, c_pad=c_pad, approx=approx),
        out_shape=(jax.ShapeDtypeStruct((M, c_pad), act_dtype),
                   jax.ShapeDtypeStruct((M, c_pad), act_dtype)),
        grid=(M // tm,),
        in_specs=[pl.BlockSpec((tm, cin_pad), row),
                  pl.BlockSpec((cin_pad, 2 * c_pad), rep),
                  pl.BlockSpec((1, 2 * c_pad), rep),
                  pl.BlockSpec((1, 2 * c_pad), rep)],
        out_specs=(pl.BlockSpec((tm, c_pad), row), pl.BlockSpec((tm, c_pad), row)),
        compiler_params=pltpu.CompilerParams(
            dimension_semantics=("parallel",), vmem_limit_bytes=vmem_limit),
    )(x2d, w, s, b)


def tail_call(h2d, y2d, wa, wb, s, b, out_dtype, approx, vmem_limit):
    M, c_pad = h2d.shape
    c2_pad = wa.shape[1]
    bs_in = jnp.dtype(h2d.dtype).itemsize
    bs_out = jnp.dtype(out_dtype).itemsize
    bpr = 2 * c_pad * bs_in + c2_pad * (bs_out + 4)
    tm = _pick_tile_m(M, bpr, vmem_limit // 2)
    row = lambda i: (i, 0)
    rep = lambda i: (0, 0)
    return pl.pallas_call(
        functools.partial(_tail_kernel, approx=approx),
        out_shape=jax.ShapeDtypeStruct((M, c2_pad), out_dtype),
        grid=(M // tm,),
        in_specs=[pl.BlockSpec((tm, c_pad), row), pl.BlockSpec((tm, c_pad), row),
                  pl.BlockSpec((c_pad, c2_pad), rep), pl.BlockSpec((c_pad, c2_pad), rep),
                  pl.BlockSpec((1, c2_pad), rep), pl.BlockSpec((1, c2_pad), rep)],
        out_specs=pl.BlockSpec((tm, c2_pad), row),
        compiler_params=pltpu.CompilerParams(
            dimension_semantics=("parallel",), vmem_limit_bytes=vmem_limit),
    )(h2d, y2d, wa, wb, s, b)


def resunit_call(h2d, ru, N, H, W, shortcut, act_dtype, approx, vmem_limit):
    M, c_pad = h2d.shape
    p1, p2 = ru["cbs1"], ru["cbs2"]
    chid, cout = p1["w"].shape[0], p2["w"].shape[0]
    chid_pad = _ceil_to(chid, _LANE)
    cout_pad = _ceil_to(cout, _LANE)
    add = bool(shortcut) and (p1["w"].shape[1] == cout)   # module: shortcut and c1 == c2

    s1, b1 = fold_bn(p1)
    s2, b2 = fold_bn(p2)
    w1 = _pad_2d(p1["w"][:, :, 0, 0].T, c_pad, chid_pad).astype(act_dtype)
    w2 = jnp.transpose(p2["w"], (2, 3, 1, 0)).reshape(9, chid, cout)     # (kh*3+kw, ci, co)
    w2 = jnp.pad(w2, ((0, 0), (0, chid_pad - chid),
                      (0, cout_pad - cout))).astype(act_dtype)

    bs = jnp.dtype(act_dtype).itemsize
    bpr = (c_pad + cout_pad) * bs + 3 * chid_pad * (4 + bs) + cout_pad * 4
    tile_h = _pick_tile_h(H, W, N, bpr, vmem_limit // 2)
    n_ht = H // tile_h
    rows_mid = tile_h * W

    mid_map = lambda g: (g, 0)                            # blocks of tile_h*W rows
    prev_map = lambda g: (jnp.maximum(g * tile_h - 1, 0), 0)       # blocks of W rows
    next_map = lambda g: (jnp.minimum((g + 1) * tile_h, N * H - 1), 0)
    rep2 = lambda g: (0, 0)
    rep3 = lambda g: (0, 0, 0)

    kern = functools.partial(_resunit_kernel, tile_h=tile_h, W=W, n_ht=n_ht,
                             add=add, approx=approx)
    return pl.pallas_call(
        kern,
        out_shape=jax.ShapeDtypeStruct((M, cout_pad), act_dtype),
        grid=(N * n_ht,),
        in_specs=[pl.BlockSpec((W, c_pad), prev_map),
                  pl.BlockSpec((rows_mid, c_pad), mid_map),
                  pl.BlockSpec((W, c_pad), next_map),
                  pl.BlockSpec((c_pad, chid_pad), rep2),
                  pl.BlockSpec((1, chid_pad), rep2),
                  pl.BlockSpec((1, chid_pad), rep2),
                  pl.BlockSpec((9, chid_pad, cout_pad), rep3),
                  pl.BlockSpec((1, cout_pad), rep2),
                  pl.BlockSpec((1, cout_pad), rep2)],
        out_specs=pl.BlockSpec((rows_mid, cout_pad), mid_map),
        compiler_params=pltpu.CompilerParams(
            dimension_semantics=("parallel",), vmem_limit_bytes=vmem_limit),
    )(h2d, h2d, h2d, w1, _rb(s1, chid_pad), _rb(b1, chid_pad),
      w2, _rb(s2, cout_pad), _rb(b2, cout_pad))


# --------------------------------- parameters ---------------------------------- #

def init_cbs(key, c_in, c_out, k):
    kw, kg, kb, km, kv = jax.random.split(key, 5)
    return dict(
        w=0.1 * jax.random.normal(kw, (c_out, c_in, k, k), jnp.float32),   # OIHW
        gamma=1.0 + 0.1 * jax.random.normal(kg, (c_out,), jnp.float32),
        beta=0.1 * jax.random.normal(kb, (c_out,), jnp.float32),
        mean=0.1 * jax.random.normal(km, (c_out,), jnp.float32),
        var=1.0 + 0.5 * jax.random.uniform(kv, (c_out,), jnp.float32),
    )


def init_c3(key, c1, c2, n, e=0.5):
    c_ = int(c2 * e)
    keys = jax.random.split(key, 3 + 2 * n)
    return dict(
        cbs1=init_cbs(keys[0], c1, c_, 1),
        cbs2=init_cbs(keys[1], c1, c_, 1),
        cbs3=init_cbs(keys[2], 2 * c_, c2, 1),
        res=[dict(cbs1=init_cbs(keys[3 + 2 * i], c_, c_, 1),
                  cbs2=init_cbs(keys[4 + 2 * i], c_, c_, 3)) for i in range(n)],
    )


# --------------------------------- C3 forward ----------------------------------- #

def c3_forward_pallas(x_nchw, params, shortcut=True, act_dtype=jnp.bfloat16,
                      out_dtype=None):
    N, C1, H, W = x_nchw.shape
    assert W % 8 == 0, "W must be a multiple of 8 for the 1-row-halo path"
    c_ = params["cbs1"]["w"].shape[0]
    C2 = params["cbs3"]["w"].shape[0]
    approx = jnp.dtype(act_dtype) == jnp.dtype(jnp.bfloat16)
    out_dtype = act_dtype if out_dtype is None else out_dtype
    vmem_limit = _vmem_limit_bytes()

    c1_pad = _ceil_to(C1, _LANE)
    c_pad = _ceil_to(c_, _LANE)
    c2_pad = _ceil_to(C2, _LANE)

    x2d = jnp.transpose(x_nchw, (0, 2, 3, 1)).reshape(N * H * W, C1)
    x2d = _pad_last(x2d.astype(act_dtype), c1_pad)

    # fused cbs1 | cbs2 stem: single matmul against the concatenated 1x1 weights
    s1, b1 = fold_bn(params["cbs1"])
    s2, b2 = fold_bn(params["cbs2"])
    w1 = _pad_2d(params["cbs1"]["w"][:, :, 0, 0].T, c1_pad, c_pad)
    w2 = _pad_2d(params["cbs2"]["w"][:, :, 0, 0].T, c1_pad, c_pad)
    w12 = jnp.concatenate([w1, w2], axis=1).astype(act_dtype)
    s12 = jnp.concatenate([_rb(s1, c_pad), _rb(s2, c_pad)], axis=1)
    b12 = jnp.concatenate([_rb(b1, c_pad), _rb(b2, c_pad)], axis=1)
    h, y2 = stem_call(x2d, w12, s12, b12, c_pad, act_dtype, approx, vmem_limit)

    for ru in params["res"]:
        h = resunit_call(h, ru, N, H, W, shortcut, act_dtype, approx, vmem_limit)

    # fused concat + cbs3 tail (split weight, no HBM concatenate)
    s3, b3 = fold_bn(params["cbs3"])
    w3 = params["cbs3"]["w"][:, :, 0, 0]                             # (C2, 2c_)
    wa = _pad_2d(w3[:, :c_].T, c_pad, c2_pad).astype(act_dtype)      # applies to h
    wb = _pad_2d(w3[:, c_:].T, c_pad, c2_pad).astype(act_dtype)      # applies to y2
    out2d = tail_call(h, y2, wa, wb, _rb(s3, c2_pad), _rb(b3, c2_pad),
                      out_dtype, approx, vmem_limit)
    out = out2d[:, :C2].reshape(N, H, W, C2)
    return jnp.transpose(out, (0, 3, 1, 2))


# -------------------------- pure-JAX reference (NCHW) --------------------------- #

def _cbs_ref(x, p, pad):
    y = lax.conv_general_dilated(x, p["w"], (1, 1), [(pad, pad), (pad, pad)],
                                 dimension_numbers=("NCHW", "OIHW", "NCHW"))
    scale, bias = fold_bn(p)
    y = y * scale[None, :, None, None] + bias[None, :, None, None]
    return y * jax.nn.sigmoid(y)


def c3_forward_ref(x, params, shortcut=True):
    h = _cbs_ref(x, params["cbs1"], 0)
    for ru in params["res"]:
        y = _cbs_ref(_cbs_ref(h, ru["cbs1"], 0), ru["cbs2"], 1)
        h = h + y if shortcut else y
    y2 = _cbs_ref(x, params["cbs2"], 0)
    return _cbs_ref(jnp.concatenate([h, y2], axis=1), params["cbs3"], 0)


# ------------------------------------ main --------------------------------------- #

if __name__ == "__main__":
    key = jax.random.PRNGKey(0)
    kx, kp = jax.random.split(key)
    N, C1, C2, n_res, H, W = 2, 4, 8, 2, 16, 16
    x = jax.random.normal(kx, (N, C1, H, W), jnp.float32)
    params = init_c3(kp, C1, C2, n_res, e=0.5)

    # f32 activations: tight check against the pure-JAX reference (both shortcut modes)
    for sc in (True, False):
        ref = jax.block_until_ready(c3_forward_ref(x, params, shortcut=sc))
        out = jax.block_until_ready(
            c3_forward_pallas(x, params, shortcut=sc, act_dtype=jnp.float32))
        assert out.shape == (N, C2, H, W), out.shape
        err = float(jnp.max(jnp.abs(out - ref)))
        assert err < 2e-4, f"f32 shortcut={sc} max abs err {err}"

    # default bf16 activations/weights (half HBM traffic): bf16-level tolerance
    ref = jax.block_until_ready(c3_forward_ref(x, params, shortcut=True))
    out_bf = jax.block_until_ready(c3_forward_pallas(x, params, shortcut=True))
    err_bf = float(jnp.max(jnp.abs(out_bf.astype(jnp.float32) - ref)))
    assert err_bf < 6e-2, f"bf16 max abs err {err_bf}"

    print("KERNEL_OK")
</pallas_src>

<mosaic_0001>
module attributes {stable_mosaic.version = 11 : i64} {
  func.func @_stem_kernel(%arg0: i32, %arg1: memref<256x128xf32, #tpu.memory_space<vmem>>, %arg2: memref<128x256xf32, #tpu.memory_space<vmem>>, %arg3: memref<1x256xf32, #tpu.memory_space<vmem>>, %arg4: memref<1x256xf32, #tpu.memory_space<vmem>>, %arg5: memref<256x128xf32, #tpu.memory_space<vmem>>, %arg6: memref<256x128xf32, #tpu.memory_space<vmem>>) attributes {dimension_semantics = [#tpu.dimension_semantics<parallel>], iteration_bounds = array<i64: 2>, scalar_prefetch = 0 : i64, scratch_operands = 0 : i64, tpu.core_type = #tpu.core_type<tc>, window_params = [{transform_indices = @transform_0, window_bounds = array<i64: 256, 128>}, {pipeline_mode = #tpu.pipeline_mode<synchronous>, transform_indices = @transform_1, window_bounds = array<i64: 128, 256>}, {pipeline_mode = #tpu.pipeline_mode<synchronous>, transform_indices = @transform_2, window_bounds = array<i64: 1, 256>}, {pipeline_mode = #tpu.pipeline_mode<synchronous>, transform_indices = @transform_3, window_bounds = array<i64: 1, 256>}, {transform_indices = @transform_4, window_bounds = array<i64: 256, 128>}, {transform_indices = @transform_5, window_bounds = array<i64: 256, 128>}]} {
    %c0 = arith.constant 0 : index
    %c0_0 = arith.constant 0 : index
    %0 = vector.load %arg1[%c0, %c0_0] : memref<256x128xf32, #tpu.memory_space<vmem>>, vector<256x128xf32>
    %c0_1 = arith.constant 0 : index
    %c0_2 = arith.constant 0 : index
    %1 = vector.load %arg2[%c0_1, %c0_2] : memref<128x256xf32, #tpu.memory_space<vmem>>, vector<128x256xf32>
    %cst = arith.constant dense<0.000000e+00> : vector<256x256xf32>
    %2 = tpu.matmul %0, %1, %cst {dimension_numbers = #tpu.dot_dimension_numbers<[1], [0], [0], [1], [0, 0, 1, 1], [], []>} : vector<256x128xf32>, vector<128x256xf32>, vector<256x256xf32> -> vector<256x256xf32>
    %c0_3 = arith.constant 0 : index
    %c0_4 = arith.constant 0 : index
    %3 = vector.load %arg3[%c0_3, %c0_4] : memref<1x256xf32, #tpu.memory_space<vmem>>, vector<1x256xf32>
    %4 = vector.broadcast %3 : vector<1x256xf32> to vector<256x256xf32>
    %5 = arith.mulf %2, %4 : vector<256x256xf32>
    %c0_5 = arith.constant 0 : index
    %c0_6 = arith.constant 0 : index
    %6 = vector.load %arg4[%c0_5, %c0_6] : memref<1x256xf32, #tpu.memory_space<vmem>>, vector<1x256xf32>
    %7 = vector.broadcast %6 : vector<1x256xf32> to vector<256x256xf32>
    %8 = arith.addf %5, %7 : vector<256x256xf32>
    %cst_7 = arith.constant 0.000000e+00 : f32
    %9 = vector.broadcast %cst_7 : f32 to vector<256x256xf32>
    %10 = arith.subf %9, %8 : vector<256x256xf32>
    %11 = math.exp %10 : vector<256x256xf32>
    %cst_8 = arith.constant 1.000000e+00 : f32
    %12 = vector.broadcast %cst_8 : f32 to vector<256x256xf32>
    %13 = arith.addf %12, %11 : vector<256x256xf32>
    %14 = tpu.reciprocal %13 : vector<256x256xf32> -> vector<256x256xf32>
    %15 = arith.mulf %8, %14 : vector<256x256xf32>
    %16 = vector.extract_strided_slice %15 {offsets = [0, 0], sizes = [256, 128], strides = [1, 1]} : vector<256x256xf32> to vector<256x128xf32>
    %c0_9 = arith.constant 0 : index
    %c0_10 = arith.constant 0 : index
    %17 = vector.load %arg5[%c0_9, %c0_10] : memref<256x128xf32, #tpu.memory_space<vmem>>, vector<256x128xf32>
    tpu.vector_store %arg5[%c0_9, %c0_10], %16 {strides = array<i32>} : memref<256x128xf32, #tpu.memory_space<vmem>>, vector<256x128xf32>,
    %18 = vector.extract_strided_slice %15 {offsets = [0, 128], sizes = [256, 128], strides = [1, 1]} : vector<256x256xf32> to vector<256x128xf32>
    %c0_11 = arith.constant 0 : index
    %c0_12 = arith.constant 0 : index
    %19 = vector.load %arg6[%c0_11, %c0_12] : memref<256x128xf32, #tpu.memory_space<vmem>>, vector<256x128xf32>
    tpu.vector_store %arg6[%c0_11, %c0_12], %18 {strides = array<i32>} : memref<256x128xf32, #tpu.memory_space<vmem>>, vector<256x128xf32>,
    return
  }
  func.func @transform_0(%arg0: i32) -> (i32, i32) {
    %c0_i32 = arith.constant 0 : i32
    %c0_i32_0 = arith.constant 0 : i32
    return %arg0, %c0_i32 : i32, i32
  }
  func.func @transform_1(%arg0: i32) -> (i32, i32) {
    %c0_i32 = arith.constant 0 : i32
    %c0_i32_0 = arith.constant 0 : i32
    %c0_i32_1 = arith.constant 0 : i32
    return %c0_i32, %c0_i32_0 : i32, i32
  }
  func.func @transform_2(%arg0: i32) -> (i32, i32) {
    %c0_i32 = arith.constant 0 : i32
    %c0_i32_0 = arith.constant 0 : i32
    %c0_i32_1 = arith.constant 0 : i32
    return %c0_i32, %c0_i32_0 : i32, i32
  }
  func.func @transform_3(%arg0: i32) -> (i32, i32) {
    %c0_i32 = arith.constant 0 : i32
    %c0_i32_0 = arith.constant 0 : i32
    %c0_i32_1 = arith.constant 0 : i32
    return %c0_i32, %c0_i32_0 : i32, i32
  }
  func.func @transform_4(%arg0: i32) -> (i32, i32) {
    %c0_i32 = arith.constant 0 : i32
    %c0_i32_0 = arith.constant 0 : i32
    return %arg0, %c0_i32 : i32, i32
  }
  func.func @transform_5(%arg0: i32) -> (i32, i32) {
    %c0_i32 = arith.constant 0 : i32
    %c0_i32_0 = arith.constant 0 : i32
    return %arg0, %c0_i32 : i32, i32
  }
}

</mosaic_0001>

<llo_original>
// kernel: tpu_custom_call.1
$region0: #{tpu_custom_call.1}
  #allocation0 [shape = 'u32[]', space=smem, size = 0x4, offset = 0x4, fixed_abs, tag = 'smem constant byte address 0x4 - core index']
  #allocation1 [shape = 'u32[144,128]{1,0:T(1,128)}', space=vmem, size = 0x12000, scoped, tag = 'internal scratch']
  %s0 = inlined_call_operand.hbm [shape: f32[512,128], index: 0, kind: input, shape index: {}]
  %s1 = inlined_call_operand.hbm [shape: f32[128,256], index: 1, kind: input, shape index: {}]
  %s2 = inlined_call_operand.vmem [shape: f32[1,256], index: 2, kind: input, shape index: {}]
  %s3 = inlined_call_operand.vmem [shape: f32[1,256], index: 3, kind: input, shape index: {}]
  %s4 = inlined_call_operand.hbm [shape: f32[512,128], index: 4, kind: output, shape index: {0}]
  %s5 = inlined_call_operand.hbm [shape: f32[512,128], index: 5, kind: output, shape index: {1}]
  %6 = xla_tuple %s4, %s5
  %s7 = sld [smem:[#allocation0]]
  $region65: #{tpu_custom_call.1} parent=0
    _
  %s9 = ssub.s32 1, %s7
  %s10 = scalar_select 0, %s9, %s7
  $region1: #{tpu_custom_call.1} parent=0
    #allocation2 [shape = 'u8[262144]{0}', space=vmem, size = 0x40000, scoped, tag = 'input window, operand 0']
    #allocation3 [shape = 's32[2]{0}', space=sflag, size = 0x8, scoped, tag = 'scoped memory for tpu_custom_call.1']
    #allocation4 [shape = 's32[2]{0}', space=sflag, size = 0x8, scoped, tag = 'scoped memory for tpu_custom_call.1']
    #allocation5 [shape = 'u8[131072]{0}', space=vmem, size = 0x20000, scoped, tag = 'input window, operand 1, single buffered']
    #allocation6 [shape = 's32[1]{0}', space=sflag, size = 0x4, scoped, tag = 'scoped memory for tpu_custom_call.1']
    #allocation7 [shape = 'u8[262144]{0}', space=vmem, size = 0x40000, scoped, tag = 'output window, operand 0']
    #allocation8 [shape = 'u8[262144]{0}', space=vmem, size = 0x40000, scoped, tag = 'output window, operand 1']
    #allocation9 [shape = 's32[2]{0}', space=sflag, size = 0x8, scoped, tag = 'scoped memory for tpu_custom_call.1']
    %11 = vsyncpa [#allocation3], 0
    %s12 = scalar_lea.sflag [#allocation3], 1
    %13 = vsyncpa %s12, 0
    %14 = vsyncpa [#allocation6], 0
    %15 = vsyncpa [#allocation4], 0
    %s16 = scalar_lea.sflag [#allocation4], 1
    %17 = vsyncpa %s16, 0
    %18 = vsyncpa [#allocation9], 0
    %s19 = scalar_lea.sflag [#allocation9], 1
    %20 = vsyncpa %s19, 0
    loop: start=0, step=1, limit=4
    $region2: #{tpu_custom_call.1} parent=1 // loop_pre_header
      _
    $region3: #{tpu_custom_call.1} parent=1 // loop_header
      %s22 = sphi 0, %s26
      %p23 = scmp.ge.s32.totalorder %s22, 4
      %s32 = sphi 0, %s34
      %s35 = sphi 0, %s32
      %s36 = sphi 0, %s35
      %s52 = sphi 0, %s36
      %s56 = sphi 0, %s56
      %s58 = sphi 0, %s56
      %s59 = sphi 0, %s58
      %s73 = sphi 0, %s59
      %s77 = sphi 0, %s77
      %s79 = sphi 0, %s77
      %s80 = sphi 0, %s79
      %s94 = sphi 0, %s80
      %s98 = sphi 0, %s98
      %s100 = sphi 0, %s98
      %s101 = sphi 0, %s100
      %s115 = sphi 0, %s101
      %s121 = sphi 0, %s123
      %s124 = sphi 0, %s121
      %s125 = sphi 0, %s124
      %s141 = sphi 0, %s125
      %s147 = sphi 0, %s149
      %s150 = sphi 0, %s147
      %s151 = sphi 0, %s150
      %s167 = sphi 0, %s151
    $region4: #{tpu_custom_call.1} parent=1 // loop_header_branch
      %25 = sbr.rel (%p23) target = $region8
    $region5: #{tpu_custom_call.1} parent=1 // loop_body
      %s27 = ssub.s32 %s22, 1
      %s28 = ssub.s32 %s22, 2
      %s29 = sadd.s32 %s22, 1
      %s30 = ssub.s32 %s22, %s29
      %p31 = scmp.eq.s32.totalorder %s30, 0
      %s33 = sadd.s32 %s32, 1
      %s34 = scalar_select %p31, %s32, %s33
      %p37 = pneg %p31
      %p38 = scmp.eq.s32.totalorder %s22, 1
      %p39 = por %p37, %p38
      %p40 = scmp.ne.s32.totalorder %s32, %s35
      %p41 = scmp.eq.s32.totalorder %s22, 0
      %p42 = por %p40, %p41
      %p43 = scmp.ne.s32.totalorder %s32, %s35
      %p44 = scmp.eq.s32.totalorder %s27, 1
      %p45 = por %p43, %p44
      %p46 = scmp.ne.s32.totalorder %s35, %s36
      %p47 = scmp.eq.s32.totalorder %s27, 0
      %p48 = por %p46, %p47
      %p49 = scmp.ne.s32.totalorder %s35, %s36
      %p50 = scmp.eq.s32.totalorder %s28, 1
      %p51 = por %p49, %p50
      %p53 = scmp.ne.s32.totalorder %s36, %s52
      %p54 = scmp.eq.s32.totalorder %s28, 0
      %p55 = por %p53, %p54
      %s57 = sadd.s32 %s56, 1
      %p60 = scmp.eq.s32.totalorder %s22, 1
      %p61 = scmp.ne.s32.totalorder %s56, %s58
      %p62 = scmp.eq.s32.totalorder %s22, 0
      %p63 = por %p61, %p62
      %p64 = scmp.ne.s32.totalorder %s56, %s58
      %p65 = scmp.eq.s32.totalorder %s27, 1
      %p66 = por %p64, %p65
      %p67 = scmp.ne.s32.totalorder %s58, %s59
      %p68 = scmp.eq.s32.totalorder %s27, 0
      %p69 = por %p67, %p68
      %p70 = scmp.ne.s32.totalorder %s58, %s59
      %p71 = scmp.eq.s32.totalorder %s28, 1
      %p72 = por %p70, %p71
      %p74 = scmp.ne.s32.totalorder %s59, %s73
      %p75 = scmp.eq.s32.totalorder %s28, 0
      %p76 = por %p74, %p75
      %s78 = sadd.s32 %s77, 1
      %p81 = scmp.eq.s32.totalorder %s22, 1
      %p82 = scmp.ne.s32.totalorder %s77, %s79
      %p83 = scmp.eq.s32.totalorder %s22, 0
      %p84 = por %p82, %p83
      %p85 = scmp.ne.s32.totalorder %s77, %s79
      %p86 = scmp.eq.s32.totalorder %s27, 1
      %p87 = por %p85, %p86
      %p88 = scmp.ne.s32.totalorder %s79, %s80
      %p89 = scmp.eq.s32.totalorder %s27, 0
      %p90 = por %p88, %p89
      %p91 = scmp.ne.s32.totalorder %s79, %s80
      %p92 = scmp.eq.s32.totalorder %s28, 1
      %p93 = por %p91, %p92
      %p95 = scmp.ne.s32.totalorder %s80, %s94
      %p96 = scmp.eq.s32.totalorder %s28, 0
      %p97 = por %p95, %p96
      %s99 = sadd.s32 %s98, 1
      %p102 = scmp.eq.s32.totalorder %s22, 1
      %p103 = scmp.ne.s32.totalorder %s98, %s100
      %p104 = scmp.eq.s32.totalorder %s22, 0
      %p105 = por %p103, %p104
      %p106 = scmp.ne.s32.totalorder %s98, %s100
      %p107 = scmp.eq.s32.totalorder %s27, 1
      %p108 = por %p106, %p107
      %p109 = scmp.ne.s32.totalorder %s100, %s101
      %p110 = scmp.eq.s32.totalorder %s27, 0
      %p111 = por %p109, %p110
      %p112 = scmp.ne.s32.totalorder %s100, %s101
      %p113 = scmp.eq.s32.totalorder %s28, 1
      %p114 = por %p112, %p113
      %p116 = scmp.ne.s32.totalorder %s101, %s115
      %p117 = scmp.eq.s32.totalorder %s28, 0
      %p118 = por %p116, %p117
      %s119 = ssub.s32 %s22, %s29
      %p120 = scmp.eq.s32.totalorder %s119, 0
      %s122 = sadd.s32 %s121, 1
      %s123 = scalar_select %p120, %s121, %s122
      %p126 = pneg %p120
      %p127 = scmp.eq.s32.totalorder %s22, 1
      %p128 = por %p126, %p127
      %p129 = scmp.ne.s32.totalorder %s121, %s124
      %p130 = scmp.eq.s32.totalorder %s22, 0
      %p131 = por %p129, %p130
      %p132 = scmp.ne.s32.totalorder %s121, %s124
      %p133 = scmp.eq.s32.totalorder %s27, 1
      %p134 = por %p132, %p133
      %p135 = scmp.ne.s32.totalorder %s124, %s125
      %p136 = scmp.eq.s32.totalorder %s27, 0
      %p137 = por %p135, %p136
      %p138 = scmp.ne.s32.totalorder %s124, %s125
      %p139 = scmp.eq.s32.totalorder %s28, 1
      %p140 = por %p138, %p139
      %p142 = scmp.ne.s32.totalorder %s125, %s141
      %p143 = scmp.eq.s32.totalorder %s28, 0
      %p144 = por %p142, %p143
      %s145 = ssub.s32 %s22, %s29
      %p146 = scmp.eq.s32.totalorder %s145, 0
      %s148 = sadd.s32 %s147, 1
      %s149 = scalar_select %p146, %s147, %s148
      %p152 = pneg %p146
      %p153 = scmp.eq.s32.totalorder %s22, 1
      %p154 = por %p152, %p153
      %p155 = scmp.ne.s32.totalorder %s147, %s150
      %p156 = scmp.eq.s32.totalorder %s22, 0
      %p157 = por %p155, %p156
      %p158 = scmp.ne.s32.totalorder %s147, %s150
      %p159 = scmp.eq.s32.totalorder %s27, 1
      %p160 = por %p158, %p159
      %p161 = scmp.ne.s32.totalorder %s150, %s151
      %p162 = scmp.eq.s32.totalorder %s27, 0
      %p163 = por %p161, %p162
      %p164 = scmp.ne.s32.totalorder %s150, %s151
      %p165 = scmp.eq.s32.totalorder %s28, 1
      %p166 = por %p164, %p165
      %p168 = scmp.ne.s32.totalorder %s151, %s167
      %p169 = scmp.eq.s32.totalorder %s28, 0
      %p170 = por %p168, %p169
      %p171 = scmp.le.s32.totalorder 1, %s22
      %p172 = scmp.lt.s32.totalorder %s22, 3
      %p173 = pnand %p171, %p172
      %p174 = pneg %p173
      // Predicated region
      $region9: #{tpu_custom_call.1} parent=5 // pred_check
        _
      $region10: #{tpu_custom_call.1} parent=5 // pred_check_branch
        %176 = sbr.rel (%p173) target = $region12
      $region11: #{tpu_custom_call.1} parent=5 // pred_region
        %s177 = ssub.s32 %s22, 1
        // Predicated region
        $region13: #{tpu_custom_call.1} parent=11 // pred_check
          %p178 = pneg %p69
        $region14: #{tpu_custom_call.1} parent=11 // pred_check_branch
          %180 = sbr.rel (%p178) target = $region16
        $region15: #{tpu_custom_call.1} parent=11 // pred_region
          %s182 = ssub.s32 4096, 4096
          %183 = vsyncadd [#allocation6], %s182
          %s184 = sshll.u32 [#allocation5], 4
          %s185 = int_to_ptr.vmem [resolvable:$true] %s184
          %190 = dma.hbm_to_vmem [thread:$0]  %s1, 4096, %s185, [#allocation6], 256, 256, 16
        $region16: #{tpu_custom_call.1} parent=11 // pred_fallthru
          _
        // Predicated region
        $region17: #{tpu_custom_call.1} parent=11 // pred_check
          %p191 = pneg %p90
        $region18: #{tpu_custom_call.1} parent=11 // pred_check_branch
          %193 = sbr.rel (%p191) target = $region20
        $region19: #{tpu_custom_call.1} parent=11 // pred_region
          _
        $region20: #{tpu_custom_call.1} parent=11 // pred_fallthru
          _
        // Predicated region
        $region21: #{tpu_custom_call.1} parent=11 // pred_check
          %p194 = pneg %p111
        $region22: #{tpu_custom_call.1} parent=11 // pred_check_branch
          %196 = sbr.rel (%p194) target = $region24
        $region23: #{tpu_custom_call.1} parent=11 // pred_region
          _
        $region24: #{tpu_custom_call.1} parent=11 // pred_fallthru
          _
      $region12: #{tpu_custom_call.1} parent=5 // pred_fallthru
        _
      %p197 = scmp.lt.s32.totalorder %s22, 2
      // Predicated region
      $region25: #{tpu_custom_call.1} parent=5 // pred_check
        %p198 = pneg %p197
      $region26: #{tpu_custom_call.1} parent=5 // pred_check_branch
        %200 = sbr.rel (%p198) target = $region28
      $region27: #{tpu_custom_call.1} parent=5 // pred_region
        // Predicated region
        $region29: #{tpu_custom_call.1} parent=27 // pred_check
          %p201 = pneg %p42
        $region30: #{tpu_custom_call.1} parent=27 // pred_check_branch
          %203 = sbr.rel (%p201) target = $region32
        $region31: #{tpu_custom_call.1} parent=27 // pred_region
          %s204 = sand.u32 %s32, 1
          %s205 = scalar_lea.sflag [#allocation3], %s204
          %s206 = sand.u32 %s32, 1
          %s207 = smul.addr %s206, 256
          %s208 = scalar_lea.vmem [#allocation2], %s207
          %s209 = smul.u32 32, %s22
          %s211 = ssub.s32 4096, 4096
          %212 = vsyncadd %s205, %s211
          %s213 = smul.addr %s209, 128
          %s214 = scalar_lea.hbm %s0, %s213
          %s215 = sshll.u32 %s208, 4
          %s216 = int_to_ptr.vmem [resolvable:$true] %s215
          %221 = dma.hbm_to_vmem [thread:$0]  %s214, 4096, %s216, %s205, 128, 128, 8
        $region32: #{tpu_custom_call.1} parent=27 // pred_fallthru
          _
      $region28: #{tpu_custom_call.1} parent=5 // pred_fallthru
        _
      %p222 = scmp.le.s32.totalorder 1, %s22
      %p223 = scmp.lt.s32.totalorder %s22, 3
      %p224 = pnand %p222, %p223
      %p225 = pneg %p224
      // Predicated region
      $region33: #{tpu_custom_call.1} parent=5 // pred_check
        _
      $region34: #{tpu_custom_call.1} parent=5 // pred_check_branch
        %227 = sbr.rel (%p224) target = $region36
      $region35: #{tpu_custom_call.1} parent=5 // pred_region
        %s228 = ssub.s32 %s22, 1
        %s229 = sand.u32 %s35, 1
        %s230 = scalar_lea.sflag [#allocation3], %s229
        %s231 = sand.u32 %s35, 1
        %s232 = smul.addr %s231, 256
        %s233 = scalar_lea.vmem [#allocation2], %s232
        // Predicated region
        $region37: #{tpu_custom_call.1} parent=35 // pred_check
          %p234 = pneg %p48
        $region38: #{tpu_custom_call.1} parent=35 // pred_check_branch
          %236 = sbr.rel (%p234) target = $region40
        $region39: #{tpu_custom_call.1} parent=35 // pred_region
          %237 = dma.done %s230, 4096
        $region40: #{tpu_custom_call.1} parent=35 // pred_fallthru
          _
        // Predicated region
        $region41: #{tpu_custom_call.1} parent=35 // pred_check
          %p238 = pneg %p69
        $region42: #{tpu_custom_call.1} parent=35 // pred_check_branch
          %240 = sbr.rel (%p238) target = $region44
        $region43: #{tpu_custom_call.1} parent=35 // pred_region
          %241 = dma.done [#allocation6], 4096
        $region44: #{tpu_custom_call.1} parent=35 // pred_fallthru
          _
        %s242 = sand.u32 %s35, 1
        %s243 = scalar_lea.sflag [#allocation3], %s242
        %s244 = sand.u32 %s35, 1
        %s245 = smul.addr %s244, 256
        %s246 = scalar_lea.vmem [#allocation2], %s245
        %p247 = pneg %p48
        %p248 = pneg %p45
        %p249 = pneg %p69
        %p250 = pneg %p66
        %p251 = pneg %p90
        %p252 = pneg %p87
        %p253 = pneg %p111
        %p254 = pneg %p108
        %p255 = pneg %p137
        %p256 = pneg %p134
        %s257 = sand.u32 %s124, 1
        %s258 = scalar_lea.sflag [#allocation4], %s257
        %s259 = sand.u32 %s124, 1
        %s260 = smul.addr %s259, 256
        %s261 = scalar_lea.vmem [#allocation7], %s260
        %p262 = pneg %p163
        %p263 = pneg %p160
        %s264 = sand.u32 %s150, 1
        %s265 = scalar_lea.sflag [#allocation9], %s264
        %s266 = sand.u32 %s150, 1
        %s267 = smul.addr %s266, 256
        %s268 = scalar_lea.vmem [#allocation8], %s267
        %s269 = smul.u32 32, %s27
        %s270 = smul.u32 32, %s27
        %s271 = smul.u32 32, %s27
        %v272 = vld [vmem:[%s233] sm:$0xff]
        %v273 = vld [vmem:[%s233 + $0x8] sm:$0xff]
        %v274 = vld [vmem:[%s233 + $0x10] sm:$0xff]
        %v275 = vld [vmem:[%s233 + $0x18] sm:$0xff]
        %v276 = vld [vmem:[%s233 + $0x20] sm:$0xff]
        %v277 = vld [vmem:[%s233 + $0x28] sm:$0xff]
        %v278 = vld [vmem:[%s233 + $0x30] sm:$0xff]
        %v279 = vld [vmem:[%s233 + $0x38] sm:$0xff]
        %v280 = vld [vmem:[%s233 + $0x40] sm:$0xff]
        %v281 = vld [vmem:[%s233 + $0x48] sm:$0xff]
        %v282 = vld [vmem:[%s233 + $0x50] sm:$0xff]
        %v283 = vld [vmem:[%s233 + $0x58] sm:$0xff]
        %v284 = vld [vmem:[%s233 + $0x60] sm:$0xff]
        %v285 = vld [vmem:[%s233 + $0x68] sm:$0xff]
        %v286 = vld [vmem:[%s233 + $0x70] sm:$0xff]
        %v287 = vld [vmem:[%s233 + $0x78] sm:$0xff]
        %v288 = vld [vmem:[%s233 + $0x80] sm:$0xff]
        %v289 = vld [vmem:[%s233 + $0x88] sm:$0xff]
        %v290 = vld [vmem:[%s233 + $0x90] sm:$0xff]
        %v291 = vld [vmem:[%s233 + $0x98] sm:$0xff]
        %v292 = vld [vmem:[%s233 + $0xa0] sm:$0xff]
        %v293 = vld [vmem:[%s233 + $0xa8] sm:$0xff]
        %v294 = vld [vmem:[%s233 + $0xb0] sm:$0xff]
        %v295 = vld [vmem:[%s233 + $0xb8] sm:$0xff]
        %v296 = vld [vmem:[%s233 + $0xc0] sm:$0xff]
        %v297 = vld [vmem:[%s233 + $0xc8] sm:$0xff]
        %v298 = vld [vmem:[%s233 + $0xd0] sm:$0xff]
        %v299 = vld [vmem:[%s233 + $0xd8] sm:$0xff]
        %v300 = vld [vmem:[%s233 + $0xe0] sm:$0xff]
        %v301 = vld [vmem:[%s233 + $0xe8] sm:$0xff]
        %v302 = vld [vmem:[%s233 + $0xf0] sm:$0xff]
        %v303 = vld [vmem:[%s233 + $0xf8] sm:$0xff]
        %v304 = vld [vmem:[#allocation5] sm:$0xff]
        %v305 = vld [vmem:[#allocation5 + $0x8] sm:$0xff]
        %v306 = vld [vmem:[#allocation5 + $0x10] sm:$0xff]
        %v307 = vld [vmem:[#allocation5 + $0x18] sm:$0xff]
        %v308 = vld [vmem:[#allocation5 + $0x20] sm:$0xff]
        %v309 = vld [vmem:[#allocation5 + $0x28] sm:$0xff]
        %v310 = vld [vmem:[#allocation5 + $0x30] sm:$0xff]
        %v311 = vld [vmem:[#allocation5 + $0x38] sm:$0xff]
        %v312 = vld [vmem:[#allocation5 + $0x40] sm:$0xff]
        %v313 = vld [vmem:[#allocation5 + $0x48] sm:$0xff]
        %v314 = vld [vmem:[#allocation5 + $0x50] sm:$0xff]
        %v315 = vld [vmem:[#allocation5 + $0x58] sm:$0xff]
        %v316 = vld [vmem:[#allocation5 + $0x60] sm:$0xff]
        %v317 = vld [vmem:[#allocation5 + $0x68] sm:$0xff]
        %v318 = vld [vmem:[#allocation5 + $0x70] sm:$0xff]
        %v319 = vld [vmem:[#allocation5 + $0x78] sm:$0xff]
        %v320 = vld [vmem:[#allocation5 + $0x80] sm:$0xff]
        %v321 = vld [vmem:[#allocation5 + $0x88] sm:$0xff]
        %v322 = vld [vmem:[#allocation5 + $0x90] sm:$0xff]
        %v323 = vld [vmem:[#allocation5 + $0x98] sm:$0xff]
        %v324 = vld [vmem:[#allocation5 + $0xa0] sm:$0xff]
        %v325 = vld [vmem:[#allocation5 + $0xa8] sm:$0xff]
        %v326 = vld [vmem:[#allocation5 + $0xb0] sm:$0xff]
        %v327 = vld [vmem:[#allocation5 + $0xb8] sm:$0xff]
        %v328 = vld [vmem:[#allocation5 + $0xc0] sm:$0xff]
        %v329 = vld [vmem:[#allocation5 + $0xc8] sm:$0xff]
        %v330 = vld [vmem:[#allocation5 + $0xd0] sm:$0xff]
        %v331 = vld [vmem:[#allocation5 + $0xd8] sm:$0xff]
        %v332 = vld [vmem:[#allocation5 + $0xe0] sm:$0xff]
        %v333 = vld [vmem:[#allocation5 + $0xe8] sm:$0xff]
        %v334 = vld [vmem:[#allocation5 + $0xf0] sm:$0xff]
        %v335 = vld [vmem:[#allocation5 + $0xf8] sm:$0xff]
        %336 = vmatprep.subr.mxu0 %v305
        %337 = vmatpush1.msra.mxu0 %v304
        %338 = vmatprep.subr.mxu0 %v307
        %339 = vmatpush1.msra.mxu0 %v306
        %340 = vmatprep.subr.mxu0 %v309
        %341 = vmatpush1.msra.mxu0 %v308
        %342 = vmatprep.subr.mxu0 %v311
        %343 = vmatpush1.msra.mxu0 %v310
        %344 = vmatprep.subr.mxu0 %v313
        %345 = vmatpush1.msra.mxu0 %v312
        %346 = vmatprep.subr.mxu0 %v315
        %347 = vmatpush1.msra.mxu0 %v314
        %348 = vmatprep.subr.mxu0 %v317
        %349 = vmatpush1.msra.mxu0 %v316
        %350 = vmatprep.subr.mxu0 %v319
        %351 = vmatpush1.msra.mxu0 %v318
        %352 = vmatprep.subr.mxu0 %v321
        %353 = vmatpush1.msra.mxu0 %v320
        %354 = vmatprep.subr.mxu0 %v323
        %355 = vmatpush1.msra.mxu0 %v322
        %356 = vmatprep.subr.mxu0 %v325
        %357 = vmatpush1.msra.mxu0 %v324
        %358 = vmatprep.subr.mxu0 %v327
        %359 = vmatpush1.msra.mxu0 %v326
        %360 = vmatprep.subr.mxu0 %v329
        %361 = vmatpush1.msra.mxu0 %v328
        %362 = vmatprep.subr.mxu0 %v331
        %363 = vmatpush1.msra.mxu0 %v330
        %364 = vmatprep.subr.mxu0 %v333
        %365 = vmatpush1.msra.mxu0 %v332
        %366 = vmatprep.subr.mxu0 %v335
        %367 = vmatpush1.msra.mxu0 %v334
        %368 = vmatprep.subr.mxu0 0.0
        %369 = vmatpush1.msra.mxu0 0.0
        %370 = vmatprep.subr.mxu0 0.0
        %371 = vmatpush1.msra.mxu0 0.0
        %372 = vmatprep.subr.mxu0 0.0
        %373 = vmatpush1.msra.mxu0 0.0
        %374 = vmatprep.subr.mxu0 0.0
        %375 = vmatpush1.msra.mxu0 0.0
        %376 = vmatprep.subr.mxu0 0.0
        %377 = vmatpush1.msra.mxu0 0.0
        %378 = vmatprep.subr.mxu0 0.0
        %379 = vmatpush1.msra.mxu0 0.0
        %380 = vmatprep.subr.mxu0 0.0
        %381 = vmatpush1.msra.mxu0 0.0
        %382 = vmatprep.subr.mxu0 0.0
        %383 = vmatpush1.msra.mxu0 0.0
        %384 = vmatprep.subr.mxu0 0.0
        %385 = vmatpush1.msra.mxu0 0.0
        %386 = vmatprep.subr.mxu0 0.0
        %387 = vmatpush1.msra.mxu0 0.0
        %388 = vmatprep.subr.mxu0 0.0
        %389 = vmatpush1.msra.mxu0 0.0
        %390 = vmatprep.subr.mxu0 0.0
        %391 = vmatpush1.msra.mxu0 0.0
        %392 = vmatprep.subr.mxu0 0.0
        %393 = vmatpush1.msra.mxu0 0.0
        %394 = vmatprep.subr.mxu0 0.0
        %395 = vmatpush1.msra.mxu0 0.0
        %396 = vmatprep.subr.mxu0 0.0
        %397 = vmatpush1.msra.mxu0 0.0
        %398 = vmatprep.subr.mxu0 0.0
        %399 = vmatpush1.msra.mxu0 0.0
        %400 = vmatprep.mubr.f32.mxu0 0.0
        %401 = vmatmul.mubr.f32.gmra.mrb[0].mxu0 %v272
        %v402 = vpop.f32.mrb[0].mxu0
        %v403 = vadd.f32 0.0, %v402
        %v404 = vpop.f32.mrb[0].mxu0
        %v405 = vadd.f32 0.0, %v404
        %406 = vmatprep.mubr.f32.mxu0 0.0
        %407 = vmatmul.mubr.f32.gmra.mrb[0].mxu0 %v273
        %v408 = vpop.f32.mrb[0].mxu0
        %v409 = vadd.f32 0.0, %v408
        %v410 = vpop.f32.mrb[0].mxu0
        %v411 = vadd.f32 0.0, %v410
        %412 = vmatprep.mubr.f32.mxu0 0.0
        %413 = vmatmul.mubr.f32.gmra.mrb[0].mxu0 %v274
        %v414 = vpop.f32.mrb[0].mxu0
        %v415 = vadd.f32 0.0, %v414
        %v416 = vpop.f32.mrb[0].mxu0
        %v417 = vadd.f32 0.0, %v416
        %418 = vmatprep.mubr.f32.mxu0 0.0
        %419 = vmatmul.mubr.f32.gmra.mrb[0].mxu0 %v275
        %v420 = vpop.f32.mrb[0].mxu0
        %v421 = vadd.f32 0.0, %v420
        %v422 = vpop.f32.mrb[0].mxu0
        %v423 = vadd.f32 0.0, %v422
        %424 = vmatprep.mubr.f32.mxu0 0.0
        %425 = vmatmul.mubr.f32.gmra.mrb[0].mxu0 %v276
        %v426 = vpop.f32.mrb[0].mxu0
        %v427 = vadd.f32 0.0, %v426
        %v428 = vpop.f32.mrb[0].mxu0
        %v429 = vadd.f32 0.0, %v428
        %430 = vmatprep.mubr.f32.mxu0 0.0
        %431 = vmatmul.mubr.f32.gmra.mrb[0].mxu0 %v277
        %v432 = vpop.f32.mrb[0].mxu0
        %v433 = vadd.f32 0.0, %v432
        %v434 = vpop.f32.mrb[0].mxu0
        %v435 = vadd.f32 0.0, %v434
        %436 = vmatprep.mubr.f32.mxu0 0.0
        %437 = vmatmul.mubr.f32.gmra.mrb[0].mxu0 %v278
        %v438 = vpop.f32.mrb[0].mxu0
        %v439 = vadd.f32 0.0, %v438
        %v440 = vpop.f32.mrb[0].mxu0
        %v441 = vadd.f32 0.0, %v440
        %442 = vmatprep.mubr.f32.mxu0 0.0
        %443 = vmatmul.mubr.f32.gmra.mrb[0].mxu0 %v279
        %v444 = vpop.f32.mrb[0].mxu0
        %v445 = vadd.f32 0.0, %v444
        %v446 = vpop.f32.mrb[0].mxu0
        %v447 = vadd.f32 0.0, %v446
        %448 = vmatprep.mubr.f32.mxu0 0.0
        %449 = vmatmul.mubr.f32.gmra.mrb[0].mxu0 %v280
        %v450 = vpop.f32.mrb[0].mxu0
        %v451 = vadd.f32 0.0, %v450
        %v452 = vpop.f32.mrb[0].mxu0
        %v453 = vadd.f32 0.0, %v452
        %454 = vmatprep.mubr.f32.mxu0 0.0
        %455 = vmatmul.mubr.f32.gmra.mrb[0].mxu0 %v281
        %v456 = vpop.f32.mrb[0].mxu0
        %v457 = vadd.f32 0.0, %v456
        %v458 = vpop.f32.mrb[0].mxu0
        %v459 = vadd.f32 0.0, %v458
        %460 = vmatprep.mubr.f32.mxu0 0.0
        %461 = vmatmul.mubr.f32.gmra.mrb[0].mxu0 %v282
        %v462 = vpop.f32.mrb[0].mxu0
        %v463 = vadd.f32 0.0, %v462
        %v464 = vpop.f32.mrb[0].mxu0
        %v465 = vadd.f32 0.0, %v464
        %466 = vmatprep.mubr.f32.mxu0 0.0
        %467 = vmatmul.mubr.f32.gmra.mrb[0].mxu0 %v283
        %v468 = vpop.f32.mrb[0].mxu0
        %v469 = vadd.f32 0.0, %v468
        %v470 = vpop.f32.mrb[0].mxu0
        %v471 = vadd.f32 0.0, %v470
        %472 = vmatprep.mubr.f32.mxu0 0.0
        %473 = vmatmul.mubr.f32.gmra.mrb[0].mxu0 %v284
        %v474 = vpop.f32.mrb[0].mxu0
        %v475 = vadd.f32 0.0, %v474
        %v476 = vpop.f32.mrb[0].mxu0
        %v477 = vadd.f32 0.0, %v476
        %478 = vmatprep.mubr.f32.mxu0 0.0
        %479 = vmatmul.mubr.f32.gmra.mrb[0].mxu0 %v285
        %v480 = vpop.f32.mrb[0].mxu0
        %v481 = vadd.f32 0.0, %v480
        %v482 = vpop.f32.mrb[0].mxu0
        %v483 = vadd.f32 0.0, %v482
        %484 = vmatprep.mubr.f32.mxu0 0.0
        %485 = vmatmul.mubr.f32.gmra.mrb[0].mxu0 %v286
        %v486 = vpop.f32.mrb[0].mxu0
        %v487 = vadd.f32 0.0, %v486
        %v488 = vpop.f32.mrb[0].mxu0
        %v489 = vadd.f32 0.0, %v488
        %490 = vmatprep.mubr.f32.mxu0 0.0
        %491 = vmatmul.mubr.f32.gmra.mrb[0].mxu0 %v287
        %v492 = vpop.f32.mrb[0].mxu0
        %v493 = vadd.f32 0.0, %v492
        %v494 = vpop.f32.mrb[0].mxu0
        %v495 = vadd.f32 0.0, %v494
        %496 = vmatprep.mubr.f32.mxu0 0.0
        %497 = vmatmul.mubr.f32.gmra.mrb[0].mxu0 %v288
        %v498 = vpop.f32.mrb[0].mxu0
        %v499 = vadd.f32 0.0, %v498
        %v500 = vpop.f32.mrb[0].mxu0
        %v501 = vadd.f32 0.0, %v500
        %502 = vmatprep.mubr.f32.mxu0 0.0
        %503 = vmatmul.mubr.f32.gmra.mrb[0].mxu0 %v289
        %v504 = vpop.f32.mrb[0].mxu0
        %v505 = vadd.f32 0.0, %v504
        %v506 = vpop.f32.mrb[0].mxu0
        %v507 = vadd.f32 0.0, %v506
        %508 = vmatprep.mubr.f32.mxu0 0.0
        %509 = vmatmul.mubr.f32.gmra.mrb[0].mxu0 %v290
        %v510 = vpop.f32.mrb[0].mxu0
        %v511 = vadd.f32 0.0, %v510
        %v512 = vpop.f32.mrb[0].mxu0
        %v513 = vadd.f32 0.0, %v512
        %514 = vmatprep.mubr.f32.mxu0 0.0
        %515 = vmatmul.mubr.f32.gmra.mrb[0].mxu0 %v291
        %v516 = vpop.f32.mrb[0].mxu0
        %v517 = vadd.f32 0.0, %v516
        %v518 = vpop.f32.mrb[0].mxu0
        %v519 = vadd.f32 0.0, %v518
        %520 = vmatprep.mubr.f32.mxu0 0.0
        %521 = vmatmul.mubr.f32.gmra.mrb[0].mxu0 %v292
        %v522 = vpop.f32.mrb[0].mxu0
        %v523 = vadd.f32 0.0, %v522
        %v524 = vpop.f32.mrb[0].mxu0
        %v525 = vadd.f32 0.0, %v524
        %526 = vmatprep.mubr.f32.mxu0 0.0
        %527 = vmatmul.mubr.f32.gmra.mrb[0].mxu0 %v293
        %v528 = vpop.f32.mrb[0].mxu0
        %v529 = vadd.f32 0.0, %v528
        %v530 = vpop.f32.mrb[0].mxu0
        %v531 = vadd.f32 0.0, %v530
        %532 = vmatprep.mubr.f32.mxu0 0.0
        %533 = vmatmul.mubr.f32.gmra.mrb[0].mxu0 %v294
        %v534 = vpop.f32.mrb[0].mxu0
        %v535 = vadd.f32 0.0, %v534
        %v536 = vpop.f32.mrb[0].mxu0
        %v537 = vadd.f32 0.0, %v536
        %538 = vmatprep.mubr.f32.mxu0 0.0
        %539 = vmatmul.mubr.f32.gmra.mrb[0].mxu0 %v295
        %v540 = vpop.f32.mrb[0].mxu0
        %v541 = vadd.f32 0.0, %v540
        %v542 = vpop.f32.mrb[0].mxu0
        %v543 = vadd.f32 0.0, %v542
        %544 = vmatprep.mubr.f32.mxu0 0.0
        %545 = vmatmul.mubr.f32.gmra.mrb[0].mxu0 %v296
        %v546 = vpop.f32.mrb[0].mxu0
        %v547 = vadd.f32 0.0, %v546
        %v548 = vpop.f32.mrb[0].mxu0
        %v549 = vadd.f32 0.0, %v548
        %550 = vmatprep.mubr.f32.mxu0 0.0
        %551 = vmatmul.mubr.f32.gmra.mrb[0].mxu0 %v297
        %v552 = vpop.f32.mrb[0].mxu0
        %v553 = vadd.f32 0.0, %v552
        %v554 = vpop.f32.mrb[0].mxu0
        %v555 = vadd.f32 0.0, %v554
        %556 = vmatprep.mubr.f32.mxu0 0.0
        %557 = vmatmul.mubr.f32.gmra.mrb[0].mxu0 %v298
        %v558 = vpop.f32.mrb[0].mxu0
        %v559 = vadd.f32 0.0, %v558
        %v560 = vpop.f32.mrb[0].mxu0
        %v561 = vadd.f32 0.0, %v560
        %562 = vmatprep.mubr.f32.mxu0 0.0
        %563 = vmatmul.mubr.f32.gmra.mrb[0].mxu0 %v299
        %v564 = vpop.f32.mrb[0].mxu0
        %v565 = vadd.f32 0.0, %v564
        %v566 = vpop.f32.mrb[0].mxu0
        %v567 = vadd.f32 0.0, %v566
        %568 = vmatprep.mubr.f32.mxu0 0.0
        %569 = vmatmul.mubr.f32.gmra.mrb[0].mxu0 %v300
        %v570 = vpop.f32.mrb[0].mxu0
        %v571 = vadd.f32 0.0, %v570
        %v572 = vpop.f32.mrb[0].mxu0
        %v573 = vadd.f32 0.0, %v572
        %574 = vmatprep.mubr.f32.mxu0 0.0
        %575 = vmatmul.mubr.f32.gmra.mrb[0].mxu0 %v301
        %v576 = vpop.f32.mrb[0].mxu0
        %v577 = vadd.f32 0.0, %v576
        %v578 = vpop.f32.mrb[0].mxu0
        %v579 = vadd.f32 0.0, %v578
        %580 = vmatprep.mubr.f32.mxu0 0.0
        %581 = vmatmul.mubr.f32.gmra.mrb[0].mxu0 %v302
        %v582 = vpop.f32.mrb[0].mxu0
        %v583 = vadd.f32 0.0, %v582
        %v584 = vpop.f32.mrb[0].mxu0
        %v585 = vadd.f32 0.0, %v584
        %586 = vmatprep.mubr.f32.mxu0 0.0
        %587 = vmatmul.mubr.f32.gmra.mrb[0].mxu0 %v303
        %v588 = vpop.f32.mrb[0].mxu0
        %v589 = vadd.f32 0.0, %v588
        %v590 = vpop.f32.mrb[0].mxu0
        %v591 = vadd.f32 0.0, %v590
        %592 = vdwg.mxu0
        %v593 = vld [vmem:[%s2] sm:$0x3]
        %v595 = vlaneseq
        %v596 = vshrl.u32 %v595, 7
        %v597 = vsub.s32 0, %v596
        %v598 = vrot.slane %v593, %v597
        %v599 = vlaneseq
        %v600 = vshrl.u32 %v599, 7
        %v601 = vsub.s32 1, %v600
        %v602 = vrot.slane %v593, %v601
        %v605 = vmul.f32 %v403, %v598
        %v606 = vmul.f32 %v405, %v602
        %v607 = vmul.f32 %v409, %v598
        %v608 = vmul.f32 %v411, %v602
        %v609 = vmul.f32 %v415, %v598
        %v610 = vmul.f32 %v417, %v602
        %v611 = vmul.f32 %v421, %v598
        %v612 = vmul.f32 %v423, %v602
        %v613 = vmul.f32 %v427, %v598
        %v614 = vmul.f32 %v429, %v602
        %v615 = vmul.f32 %v433, %v598
        %v616 = vmul.f32 %v435, %v602
        %v617 = vmul.f32 %v439, %v598
        %v618 = vmul.f32 %v441, %v602
        %v619 = vmul.f32 %v445, %v598
        %v620 = vmul.f32 %v447, %v602
        %v621 = vmul.f32 %v451, %v598
        %v622 = vmul.f32 %v453, %v602
        %v623 = vmul.f32 %v457, %v598
        %v624 = vmul.f32 %v459, %v602
        %v625 = vmul.f32 %v463, %v598
        %v626 = vmul.f32 %v465, %v602
        %v627 = vmul.f32 %v469, %v598
        %v628 = vmul.f32 %v471, %v602
        %v629 = vmul.f32 %v475, %v598
        %v630 = vmul.f32 %v477, %v602
        %v631 = vmul.f32 %v481, %v598
        %v632 = vmul.f32 %v483, %v602
        %v633 = vmul.f32 %v487, %v598
        %v634 = vmul.f32 %v489, %v602
        %v635 = vmul.f32 %v493, %v598
        %v636 = vmul.f32 %v495, %v602
        %v637 = vmul.f32 %v499, %v598
        %v638 = vmul.f32 %v501, %v602
        %v639 = vmul.f32 %v505, %v598
        %v640 = vmul.f32 %v507, %v602
        %v641 = vmul.f32 %v511, %v598
        %v642 = vmul.f32 %v513, %v602
        %v643 = vmul.f32 %v517, %v598
        %v644 = vmul.f32 %v519, %v602
        %v645 = vmul.f32 %v523, %v598
        %v646 = vmul.f32 %v525, %v602
        %v647 = vmul.f32 %v529, %v598
        %v648 = vmul.f32 %v531, %v602
        %v649 = vmul.f32 %v535, %v598
        %v650 = vmul.f32 %v537, %v602
        %v651 = vmul.f32 %v541, %v598
        %v652 = vmul.f32 %v543, %v602
        %v653 = vmul.f32 %v547, %v598
        %v654 = vmul.f32 %v549, %v602
        %v655 = vmul.f32 %v553, %v598
        %v656 = vmul.f32 %v555, %v602
        %v657 = vmul.f32 %v559, %v598
        %v658 = vmul.f32 %v561, %v602
        %v659 = vmul.f32 %v565, %v598
        %v660 = vmul.f32 %v567, %v602
        %v661 = vmul.f32 %v571, %v598
        %v662 = vmul.f32 %v573, %v602
        %v663 = vmul.f32 %v577, %v598
        %v664 = vmul.f32 %v579, %v602
        %v665 = vmul.f32 %v583, %v598
        %v666 = vmul.f32 %v585, %v602
        %v667 = vmul.f32 %v589, %v598
        %v668 = vmul.f32 %v591, %v602
        %v669 = vld [vmem:[%s3] sm:$0x3]
        %v671 = vlaneseq
        %v672 = vshrl.u32 %v671, 7
        %v673 = vsub.s32 0, %v672
        %v674 = vrot.slane %v669, %v673
        %v675 = vlaneseq
        %v676 = vshrl.u32 %v675, 7
        %v677 = vsub.s32 1, %v676
        %v678 = vrot.slane %v669, %v677
        %v681 = vadd.f32 %v605, %v674
        %v682 = vadd.f32 %v606, %v678
        %v683 = vadd.f32 %v607, %v674
        %v684 = vadd.f32 %v608, %v678
        %v685 = vadd.f32 %v609, %v674
        %v686 = vadd.f32 %v610, %v678
        %v687 = vadd.f32 %v611, %v674
        %v688 = vadd.f32 %v612, %v678
        %v689 = vadd.f32 %v613, %v674
        %v690 = vadd.f32 %v614, %v678
        %v691 = vadd.f32 %v615, %v674
        %v692 = vadd.f32 %v616, %v678
        %v693 = vadd.f32 %v617, %v674
        %v694 = vadd.f32 %v618, %v678
        %v695 = vadd.f32 %v619, %v674
        %v696 = vadd.f32 %v620, %v678
        %v697 = vadd.f32 %v621, %v674
        %v698 = vadd.f32 %v622, %v678
        %v699 = vadd.f32 %v623, %v674
        %v700 = vadd.f32 %v624, %v678
        %v701 = vadd.f32 %v625, %v674
        %v702 = vadd.f32 %v626, %v678
        %v703 = vadd.f32 %v627, %v674
        %v704 = vadd.f32 %v628, %v678
        %v705 = vadd.f32 %v629, %v674
        %v706 = vadd.f32 %v630, %v678
        %v707 = vadd.f32 %v631, %v674
        %v708 = vadd.f32 %v632, %v678
        %v709 = vadd.f32 %v633, %v674
        %v710 = vadd.f32 %v634, %v678
        %v711 = vadd.f32 %v635, %v674
        %v712 = vadd.f32 %v636, %v678
        %v713 = vadd.f32 %v637, %v674
        %v714 = vadd.f32 %v638, %v678
        %v715 = vadd.f32 %v639, %v674
        %v716 = vadd.f32 %v640, %v678
        %v717 = vadd.f32 %v641, %v674
        %v718 = vadd.f32 %v642, %v678
        %v719 = vadd.f32 %v643, %v674
        %v720 = vadd.f32 %v644, %v678
        %v721 = vadd.f32 %v645, %v674
        %v722 = vadd.f32 %v646, %v678
        %v723 = vadd.f32 %v647, %v674
        %v724 = vadd.f32 %v648, %v678
        %v725 = vadd.f32 %v649, %v674
        %v726 = vadd.f32 %v650, %v678
        %v727 = vadd.f32 %v651, %v674
        %v728 = vadd.f32 %v652, %v678
        %v729 = vadd.f32 %v653, %v674
        %v730 = vadd.f32 %v654, %v678
        %v731 = vadd.f32 %v655, %v674
        %v732 = vadd.f32 %v656, %v678
        %v733 = vadd.f32 %v657, %v674
        %v734 = vadd.f32 %v658, %v678
        %v735 = vadd.f32 %v659, %v674
        %v736 = vadd.f32 %v660, %v678
        %v737 = vadd.f32 %v661, %v674
        %v738 = vadd.f32 %v662, %v678
        %v739 = vadd.f32 %v663, %v674
        %v740 = vadd.f32 %v664, %v678
        %v741 = vadd.f32 %v665, %v674
        %v742 = vadd.f32 %v666, %v678
        %v743 = vadd.f32 %v667, %v674
        %v744 = vadd.f32 %v668, %v678
        %v745 = vsub.f32 0.0, %v681
        %v746 = vsub.f32 0.0, %v682
        %v747 = vsub.f32 0.0, %v683
        %v748 = vsub.f32 0.0, %v684
        %v749 = vsub.f32 0.0, %v685
        %v750 = vsub.f32 0.0, %v686
        %v751 = vsub.f32 0.0, %v687
        %v752 = vsub.f32 0.0, %v688
        %v753 = vsub.f32 0.0, %v689
        %v754 = vsub.f32 0.0, %v690
        %v755 = vsub.f32 0.0, %v691
        %v756 = vsub.f32 0.0, %v692
        %v757 = vsub.f32 0.0, %v693
        %v758 = vsub.f32 0.0, %v694
        %v759 = vsub.f32 0.0, %v695
        %v760 = vsub.f32 0.0, %v696
        %v761 = vsub.f32 0.0, %v697
        %v762 = vsub.f32 0.0, %v698
        %v763 = vsub.f32 0.0, %v699
        %v764 = vsub.f32 0.0, %v700
        %v765 = vsub.f32 0.0, %v701
        %v766 = vsub.f32 0.0, %v702
        %v767 = vsub.f32 0.0, %v703
        %v768 = vsub.f32 0.0, %v704
        %v769 = vsub.f32 0.0, %v705
        %v770 = vsub.f32 0.0, %v706
        %v771 = vsub.f32 0.0, %v707
        %v772 = vsub.f32 0.0, %v708
        %v773 = vsub.f32 0.0, %v709
        %v774 = vsub.f32 0.0, %v710
        %v775 = vsub.f32 0.0, %v711
        %v776 = vsub.f32 0.0, %v712
        %v777 = vsub.f32 0.0, %v713
        %v778 = vsub.f32 0.0, %v714
        %v779 = vsub.f32 0.0, %v715
        %v780 = vsub.f32 0.0, %v716
        %v781 = vsub.f32 0.0, %v717
        %v782 = vsub.f32 0.0, %v718
        %v783 = vsub.f32 0.0, %v719
        %v784 = vsub.f32 0.0, %v720
        %v785 = vsub.f32 0.0, %v721
        %v786 = vsub.f32 0.0, %v722
        %v787 = vsub.f32 0.0, %v723
        %v788 = vsub.f32 0.0, %v724
        %v789 = vsub.f32 0.0, %v725
        %v790 = vsub.f32 0.0, %v726
        %v791 = vsub.f32 0.0, %v727
        %v792 = vsub.f32 0.0, %v728
        %v793 = vsub.f32 0.0, %v729
        %v794 = vsub.f32 0.0, %v730
        %v795 = vsub.f32 0.0, %v731
        %v796 = vsub.f32 0.0, %v732
        %v797 = vsub.f32 0.0, %v733
        %v798 = vsub.f32 0.0, %v734
        %v799 = vsub.f32 0.0, %v735
        %v800 = vsub.f32 0.0, %v736
        %v801 = vsub.f32 0.0, %v737
        %v802 = vsub.f32 0.0, %v738
        %v803 = vsub.f32 0.0, %v739
        %v804 = vsub.f32 0.0, %v740
        %v805 = vsub.f32 0.0, %v741
        %v806 = vsub.f32 0.0, %v742
        %v807 = vsub.f32 0.0, %v743
        %v808 = vsub.f32 0.0, %v744
        %v809 = vmul.f32 %v745, 1.442695
        %v810 = vpow.pop %v809
        %v811 = vmul.f32 %v746, 1.442695
        %v812 = vpow.pop %v811
        %v813 = vmul.f32 %v747, 1.442695
        %v814 = vpow.pop %v813
        %v815 = vmul.f32 %v748, 1.442695
        %v816 = vpow.pop %v815
        %v817 = vmul.f32 %v749, 1.442695
        %v818 = vpow.pop %v817
        %v819 = vmul.f32 %v750, 1.442695
        %v820 = vpow.pop %v819
        %v821 = vmul.f32 %v751, 1.442695
        %v822 = vpow.pop %v821
        %v823 = vmul.f32 %v752, 1.442695
        %v824 = vpow.pop %v823
        %v825 = vmul.f32 %v753, 1.442695
        %v826 = vpow.pop %v825
        %v827 = vmul.f32 %v754, 1.442695
        %v828 = vpow.pop %v827
        %v829 = vmul.f32 %v755, 1.442695
        %v830 = vpow.pop %v829
        %v831 = vmul.f32 %v756, 1.442695
        %v832 = vpow.pop %v831
        %v833 = vmul.f32 %v757, 1.442695
        %v834 = vpow.pop %v833
        %v835 = vmul.f32 %v758, 1.442695
        %v836 = vpow.pop %v835
        %v837 = vmul.f32 %v759, 1.442695
        %v838 = vpow.pop %v837
        %v839 = vmul.f32 %v760, 1.442695
        %v840 = vpow.pop %v839
        %v841 = vmul.f32 %v761, 1.442695
        %v842 = vpow.pop %v841
        %v843 = vmul.f32 %v762, 1.442695
        %v844 = vpow.pop %v843
        %v845 = vmul.f32 %v763, 1.442695
        %v846 = vpow.pop %v845
        %v847 = vmul.f32 %v764, 1.442695
        %v848 = vpow.pop %v847
        %v849 = vmul.f32 %v765, 1.442695
        %v850 = vpow.pop %v849
        %v851 = vmul.f32 %v766, 1.442695
        %v852 = vpow.pop %v851
        %v853 = vmul.f32 %v767, 1.442695
        %v854 = vpow.pop %v853
        %v855 = vmul.f32 %v768, 1.442695
        %v856 = vpow.pop %v855
        %v857 = vmul.f32 %v769, 1.442695
        %v858 = vpow.pop %v857
        %v859 = vmul.f32 %v770, 1.442695
        %v860 = vpow.pop %v859
        %v861 = vmul.f32 %v771, 1.442695
        %v862 = vpow.pop %v861
        %v863 = vmul.f32 %v772, 1.442695
        %v864 = vpow.pop %v863
        %v865 = vmul.f32 %v773, 1.442695
        %v866 = vpow.pop %v865
        %v867 = vmul.f32 %v774, 1.442695
        %v868 = vpow.pop %v867
        %v869 = vmul.f32 %v775, 1.442695
        %v870 = vpow.pop %v869
        %v871 = vmul.f32 %v776, 1.442695
        %v872 = vpow.pop %v871
        %v873 = vmul.f32 %v777, 1.442695
        %v874 = vpow.pop %v873
        %v875 = vmul.f32 %v778, 1.442695
        %v876 = vpow.pop %v875
        %v877 = vmul.f32 %v779, 1.442695
        %v878 = vpow.pop %v877
        %v879 = vmul.f32 %v780, 1.442695
        %v880 = vpow.pop %v879
        %v881 = vmul.f32 %v781, 1.442695
        %v882 = vpow.pop %v881
        %v883 = vmul.f32 %v782, 1.442695
        %v884 = vpow.pop %v883
        %v885 = vmul.f32 %v783, 1.442695
        %v886 = vpow.pop %v885
        %v887 = vmul.f32 %v784, 1.442695
        %v888 = vpow.pop %v887
        %v889 = vmul.f32 %v785, 1.442695
        %v890 = vpow.pop %v889
        %v891 = vmul.f32 %v786, 1.442695
        %v892 = vpow.pop %v891
        %v893 = vmul.f32 %v787, 1.442695
        %v894 = vpow.pop %v893
        %v895 = vmul.f32 %v788, 1.442695
        %v896 = vpow.pop %v895
        %v897 = vmul.f32 %v789, 1.442695
        %v898 = vpow.pop %v897
        %v899 = vmul.f32 %v790, 1.442695
        %v900 = vpow.pop %v899
        %v901 = vmul.f32 %v791, 1.442695
        %v902 = vpow.pop %v901
        %v903 = vmul.f32 %v792, 1.442695
        %v904 = vpow.pop %v903
        %v905 = vmul.f32 %v793, 1.442695
        %v906 = vpow.pop %v905
        %v907 = vmul.f32 %v794, 1.442695
        %v908 = vpow.pop %v907
        %v909 = vmul.f32 %v795, 1.442695
        %v910 = vpow.pop %v909
        %v911 = vmul.f32 %v796, 1.442695
        %v912 = vpow.pop %v911
        %v913 = vmul.f32 %v797, 1.442695
        %v914 = vpow.pop %v913
        %v915 = vmul.f32 %v798, 1.442695
        %v916 = vpow.pop %v915
        %v917 = vmul.f32 %v799, 1.442695
        %v918 = vpow.pop %v917
        %v919 = vmul.f32 %v800, 1.442695
        %v920 = vpow.pop %v919
        %v921 = vmul.f32 %v801, 1.442695
        %v922 = vpow.pop %v921
        %v923 = vmul.f32 %v802, 1.442695
        %v924 = vpow.pop %v923
        %v925 = vmul.f32 %v803, 1.442695
        %v926 = vpow.pop %v925
        %v927 = vmul.f32 %v804, 1.442695
        %v928 = vpow.pop %v927
        %v929 = vmul.f32 %v805, 1.442695
        %v930 = vpow.pop %v929
        %v931 = vmul.f32 %v806, 1.442695
        %v932 = vpow.pop %v931
        %v933 = vmul.f32 %v807, 1.442695
        %v934 = vpow.pop %v933
        %v935 = vmul.f32 %v808, 1.442695
        %v936 = vpow.pop %v935
        %v937 = vadd.f32 %v810, 1.0
        %v938 = vadd.f32 %v812, 1.0
        %v939 = vadd.f32 %v814, 1.0
        %v940 = vadd.f32 %v816, 1.0
        %v941 = vadd.f32 %v818, 1.0
        %v942 = vadd.f32 %v820, 1.0
        %v943 = vadd.f32 %v822, 1.0
        %v944 = vadd.f32 %v824, 1.0
        %v945 = vadd.f32 %v826, 1.0
        %v946 = vadd.f32 %v828, 1.0
        %v947 = vadd.f32 %v830, 1.0
        %v948 = vadd.f32 %v832, 1.0
        %v949 = vadd.f32 %v834, 1.0
        %v950 = vadd.f32 %v836, 1.0
        %v951 = vadd.f32 %v838, 1.0
        %v952 = vadd.f32 %v840, 1.0
        %v953 = vadd.f32 %v842, 1.0
        %v954 = vadd.f32 %v844, 1.0
        %v955 = vadd.f32 %v846, 1.0
        %v956 = vadd.f32 %v848, 1.0
        %v957 = vadd.f32 %v850, 1.0
        %v958 = vadd.f32 %v852, 1.0
        %v959 = vadd.f32 %v854, 1.0
        %v960 = vadd.f32 %v856, 1.0
        %v961 = vadd.f32 %v858, 1.0
        %v962 = vadd.f32 %v860, 1.0
        %v963 = vadd.f32 %v862, 1.0
        %v964 = vadd.f32 %v864, 1.0
        %v965 = vadd.f32 %v866, 1.0
        %v966 = vadd.f32 %v868, 1.0
        %v967 = vadd.f32 %v870, 1.0
        %v968 = vadd.f32 %v872, 1.0
        %v969 = vadd.f32 %v874, 1.0
        %v970 = vadd.f32 %v876, 1.0
        %v971 = vadd.f32 %v878, 1.0
        %v972 = vadd.f32 %v880, 1.0
        %v973 = vadd.f32 %v882, 1.0
        %v974 = vadd.f32 %v884, 1.0
        %v975 = vadd.f32 %v886, 1.0
        %v976 = vadd.f32 %v888, 1.0
        %v977 = vadd.f32 %v890, 1.0
        %v978 = vadd.f32 %v892, 1.0
        %v979 = vadd.f32 %v894, 1.0
        %v980 = vadd.f32 %v896, 1.0
        %v981 = vadd.f32 %v898, 1.0
        %v982 = vadd.f32 %v900, 1.0
        %v983 = vadd.f32 %v902, 1.0
        %v984 = vadd.f32 %v904, 1.0
        %v985 = vadd.f32 %v906, 1.0
        %v986 = vadd.f32 %v908, 1.0
        %v987 = vadd.f32 %v910, 1.0
        %v988 = vadd.f32 %v912, 1.0
        %v989 = vadd.f32 %v914, 1.0
        %v990 = vadd.f32 %v916, 1.0
        %v991 = vadd.f32 %v918, 1.0
        %v992 = vadd.f32 %v920, 1.0
        %v993 = vadd.f32 %v922, 1.0
        %v994 = vadd.f32 %v924, 1.0
        %v995 = vadd.f32 %v926, 1.0
        %v996 = vadd.f32 %v928, 1.0
        %v997 = vadd.f32 %v930, 1.0
        %v998 = vadd.f32 %v932, 1.0
        %v999 = vadd.f32 %v934, 1.0
        %v1000 = vadd.f32 %v936, 1.0
        %v1001 = vrcp.pop %v937
        %v1002 = vrcp.pop %v938
        %v1003 = vrcp.pop %v939
        %v1004 = vrcp.pop %v940
        %v1005 = vrcp.pop %v941
        %v1006 = vrcp.pop %v942
        %v1007 = vrcp.pop %v943
        %v1008 = vrcp.pop %v944
        %v1009 = vrcp.pop %v945
        %v1010 = vrcp.pop %v946
        %v1011 = vrcp.pop %v947
        %v1012 = vrcp.pop %v948
        %v1013 = vrcp.pop %v949
        %v1014 = vrcp.pop %v950
        %v1015 = vrcp.pop %v951
        %v1016 = vrcp.pop %v952
        %v1017 = vrcp.pop %v953
        %v1018 = vrcp.pop %v954
        %v1019 = vrcp.pop %v955
        %v1020 = vrcp.pop %v956
        %v1021 = vrcp.pop %v957
        %v1022 = vrcp.pop %v958
        %v1023 = vrcp.pop %v959
        %v1024 = vrcp.pop %v960
        %v1025 = vrcp.pop %v961
        %v1026 = vrcp.pop %v962
        %v1027 = vrcp.pop %v963
        %v1028 = vrcp.pop %v964
        %v1029 = vrcp.pop %v965
        %v1030 = vrcp.pop %v966
        %v1031 = vrcp.pop %v967
        %v1032 = vrcp.pop %v968
        %v1033 = vrcp.pop %v969
        %v1034 = vrcp.pop %v970
        %v1035 = vrcp.pop %v971
        %v1036 = vrcp.pop %v972
        %v1037 = vrcp.pop %v973
        %v1038 = vrcp.pop %v974
        %v1039 = vrcp.pop %v975
        %v1040 = vrcp.pop %v976
        %v1041 = vrcp.pop %v977
        %v1042 = vrcp.pop %v978
        %v1043 = vrcp.pop %v979
        %v1044 = vrcp.pop %v980
        %v1045 = vrcp.pop %v981
        %v1046 = vrcp.pop %v982
        %v1047 = vrcp.pop %v983
        %v1048 = vrcp.pop %v984
        %v1049 = vrcp.pop %v985
        %v1050 = vrcp.pop %v986
        %v1051 = vrcp.pop %v987
        %v1052 = vrcp.pop %v988
        %v1053 = vrcp.pop %v989
        %v1054 = vrcp.pop %v990
        %v1055 = vrcp.pop %v991
        %v1056 = vrcp.pop %v992
        %v1057 = vrcp.pop %v993
        %v1058 = vrcp.pop %v994
        %v1059 = vrcp.pop %v995
        %v1060 = vrcp.pop %v996
        %v1061 = vrcp.pop %v997
        %v1062 = vrcp.pop %v998
        %v1063 = vrcp.pop %v999
        %v1064 = vrcp.pop %v1000
        %v1065 = vmul.f32 %v681, %v1001
        %v1066 = vmul.f32 %v682, %v1002
        %v1067 = vmul.f32 %v683, %v1003
        %v1068 = vmul.f32 %v684, %v1004
        %v1069 = vmul.f32 %v685, %v1005
        %v1070 = vmul.f32 %v686, %v1006
        %v1071 = vmul.f32 %v687, %v1007
        %v1072 = vmul.f32 %v688, %v1008
        %v1073 = vmul.f32 %v689, %v1009
        %v1074 = vmul.f32 %v690, %v1010
        %v1075 = vmul.f32 %v691, %v1011
        %v1076 = vmul.f32 %v692, %v1012
        %v1077 = vmul.f32 %v693, %v1013
        %v1078 = vmul.f32 %v694, %v1014
        %v1079 = vmul.f32 %v695, %v1015
        %v1080 = vmul.f32 %v696, %v1016
        %v1081 = vmul.f32 %v697, %v1017
        %v1082 = vmul.f32 %v698, %v1018
        %v1083 = vmul.f32 %v699, %v1019
        %v1084 = vmul.f32 %v700, %v1020
        %v1085 = vmul.f32 %v701, %v1021
        %v1086 = vmul.f32 %v702, %v1022
        %v1087 = vmul.f32 %v703, %v1023
        %v1088 = vmul.f32 %v704, %v1024
        %v1089 = vmul.f32 %v705, %v1025
        %v1090 = vmul.f32 %v706, %v1026
        %v1091 = vmul.f32 %v707, %v1027
        %v1092 = vmul.f32 %v708, %v1028
        %v1093 = vmul.f32 %v709, %v1029
        %v1094 = vmul.f32 %v710, %v1030
        %v1095 = vmul.f32 %v711, %v1031
        %v1096 = vmul.f32 %v712, %v1032
        %v1097 = vmul.f32 %v713, %v1033
        %v1098 = vmul.f32 %v714, %v1034
        %v1099 = vmul.f32 %v715, %v1035
        %v1100 = vmul.f32 %v716, %v1036
        %v1101 = vmul.f32 %v717, %v1037
        %v1102 = vmul.f32 %v718, %v1038
        %v1103 = vmul.f32 %v719, %v1039
        %v1104 = vmul.f32 %v720, %v1040
        %v1105 = vmul.f32 %v721, %v1041
        %v1106 = vmul.f32 %v722, %v1042
        %v1107 = vmul.f32 %v723, %v1043
        %v1108 = vmul.f32 %v724, %v1044
        %v1109 = vmul.f32 %v725, %v1045
        %v1110 = vmul.f32 %v726, %v1046
        %v1111 = vmul.f32 %v727, %v1047
        %v1112 = vmul.f32 %v728, %v1048
        %v1113 = vmul.f32 %v729, %v1049
        %v1114 = vmul.f32 %v730, %v1050
        %v1115 = vmul.f32 %v731, %v1051
        %v1116 = vmul.f32 %v732, %v1052
        %v1117 = vmul.f32 %v733, %v1053
        %v1118 = vmul.f32 %v734, %v1054
        %v1119 = vmul.f32 %v735, %v1055
        %v1120 = vmul.f32 %v736, %v1056
        %v1121 = vmul.f32 %v737, %v1057
        %v1122 = vmul.f32 %v738, %v1058
        %v1123 = vmul.f32 %v739, %v1059
        %v1124 = vmul.f32 %v740, %v1060
        %v1125 = vmul.f32 %v741, %v1061
        %v1126 = vmul.f32 %v742, %v1062
        %v1127 = vmul.f32 %v743, %v1063
        %v1128 = vmul.f32 %v744, %v1064
        %1129 = vst [vmem:[%s261] sm:$0xff] %v1065
        %1130 = vst [vmem:[%s261 + $0x8] sm:$0xff] %v1067
        %1131 = vst [vmem:[%s261 + $0x10] sm:$0xff] %v1069
        %1132 = vst [vmem:[%s261 + $0x18] sm:$0xff] %v1071
        %1133 = vst [vmem:[%s261 + $0x20] sm:$0xff] %v1073
        %1134 = vst [vmem:[%s261 + $0x28] sm:$0xff] %v1075
        %1135 = vst [vmem:[%s261 + $0x30] sm:$0xff] %v1077
        %1136 = vst [vmem:[%s261 + $0x38] sm:$0xff] %v1079
        %1137 = vst [vmem:[%s261 + $0x40] sm:$0xff] %v1081
        %1138 = vst [vmem:[%s261 + $0x48] sm:$0xff] %v1083
        %1139 = vst [vmem:[%s261 + $0x50] sm:$0xff] %v1085
        %1140 = vst [vmem:[%s261 + $0x58] sm:$0xff] %v1087
        %1141 = vst [vmem:[%s261 + $0x60] sm:$0xff] %v1089
        %1142 = vst [vmem:[%s261 + $0x68] sm:$0xff] %v1091
        %1143 = vst [vmem:[%s261 + $0x70] sm:$0xff] %v1093
        %1144 = vst [vmem:[%s261 + $0x78] sm:$0xff] %v1095
        %1145 = vst [vmem:[%s261 + $0x80] sm:$0xff] %v1097
        %1146 = vst [vmem:[%s261 + $0x88] sm:$0xff] %v1099
        %1147 = vst [vmem:[%s261 + $0x90] sm:$0xff] %v1101
        %1148 = vst [vmem:[%s261 + $0x98] sm:$0xff] %v1103
        %1149 = vst [vmem:[%s261 + $0xa0] sm:$0xff] %v1105
        %1150 = vst [vmem:[%s261 + $0xa8] sm:$0xff] %v1107
        %1151 = vst [vmem:[%s261 + $0xb0] sm:$0xff] %v1109
        %1152 = vst [vmem:[%s261 + $0xb8] sm:$0xff] %v1111
        %1153 = vst [vmem:[%s261 + $0xc0] sm:$0xff] %v1113
        %1154 = vst [vmem:[%s261 + $0xc8] sm:$0xff] %v1115
        %1155 = vst [vmem:[%s261 + $0xd0] sm:$0xff] %v1117
        %1156 = vst [vmem:[%s261 + $0xd8] sm:$0xff] %v1119
        %1157 = vst [vmem:[%s261 + $0xe0] sm:$0xff] %v1121
        %1158 = vst [vmem:[%s261 + $0xe8] sm:$0xff] %v1123
        %1159 = vst [vmem:[%s261 + $0xf0] sm:$0xff] %v1125
        %1160 = vst [vmem:[%s261 + $0xf8] sm:$0xff] %v1127
        %1161 = vst [vmem:[%s268] sm:$0xff] %v1066
        %1162 = vst [vmem:[%s268 + $0x8] sm:$0xff] %v1068
        %1163 = vst [vmem:[%s268 + $0x10] sm:$0xff] %v1070
        %1164 = vst [vmem:[%s268 + $0x18] sm:$0xff] %v1072
        %1165 = vst [vmem:[%s268 + $0x20] sm:$0xff] %v1074
        %1166 = vst [vmem:[%s268 + $0x28] sm:$0xff] %v1076
        %1167 = vst [vmem:[%s268 + $0x30] sm:$0xff] %v1078
        %1168 = vst [vmem:[%s268 + $0x38] sm:$0xff] %v1080
        %1169 = vst [vmem:[%s268 + $0x40] sm:$0xff] %v1082
        %1170 = vst [vmem:[%s268 + $0x48] sm:$0xff] %v1084
        %1171 = vst [vmem:[%s268 + $0x50] sm:$0xff] %v1086
        %1172 = vst [vmem:[%s268 + $0x58] sm:$0xff] %v1088
        %1173 = vst [vmem:[%s268 + $0x60] sm:$0xff] %v1090
        %1174 = vst [vmem:[%s268 + $0x68] sm:$0xff] %v1092
        %1175 = vst [vmem:[%s268 + $0x70] sm:$0xff] %v1094
        %1176 = vst [vmem:[%s268 + $0x78] sm:$0xff] %v1096
        %1177 = vst [vmem:[%s268 + $0x80] sm:$0xff] %v1098
        %1178 = vst [vmem:[%s268 + $0x88] sm:$0xff] %v1100
        %1179 = vst [vmem:[%s268 + $0x90] sm:$0xff] %v1102
        %1180 = vst [vmem:[%s268 + $0x98] sm:$0xff] %v1104
        %1181 = vst [vmem:[%s268 + $0xa0] sm:$0xff] %v1106
        %1182 = vst [vmem:[%s268 + $0xa8] sm:$0xff] %v1108
        %1183 = vst [vmem:[%s268 + $0xb0] sm:$0xff] %v1110
        %1184 = vst [vmem:[%s268 + $0xb8] sm:$0xff] %v1112
        %1185 = vst [vmem:[%s268 + $0xc0] sm:$0xff] %v1114
        %1186 = vst [vmem:[%s268 + $0xc8] sm:$0xff] %v1116
        %1187 = vst [vmem:[%s268 + $0xd0] sm:$0xff] %v1118
        %1188 = vst [vmem:[%s268 + $0xd8] sm:$0xff] %v1120
        %1189 = vst [vmem:[%s268 + $0xe0] sm:$0xff] %v1122
        %1190 = vst [vmem:[%s268 + $0xe8] sm:$0xff] %v1124
        %1191 = vst [vmem:[%s268 + $0xf0] sm:$0xff] %v1126
        %1192 = vst [vmem:[%s268 + $0xf8] sm:$0xff] %v1128
        %s1193 = sand.u32 %s124, 1
        %s1194 = scalar_lea.sflag [#allocation4], %s1193
        %s1195 = sand.u32 %s124, 1
        %s1196 = smul.addr %s1195, 256
        %s1197 = scalar_lea.vmem [#allocation7], %s1196
        %s1198 = sand.u32 %s150, 1
        %s1199 = scalar_lea.sflag [#allocation9], %s1198
        %s1200 = sand.u32 %s150, 1
        %s1201 = smul.addr %s1200, 256
        %s1202 = scalar_lea.vmem [#allocation8], %s1201
        // Predicated region
        $region45: #{tpu_custom_call.1} parent=35 // pred_check
          %p1203 = pneg %p134
        $region46: #{tpu_custom_call.1} parent=35 // pred_check_branch
          %1205 = sbr.rel (%p1203) target = $region48
        $region47: #{tpu_custom_call.1} parent=35 // pred_region
          %s1206 = smul.u32 32, %s27
          %s1208 = ssub.s32 4096, 4096
          %1209 = vsyncadd %s1194, %s1208
          %s1210 = smul.addr %s1206, 128
          %s1211 = scalar_lea.hbm %s4, %s1210
          %s1212 = sshll.u32 %s1197, 4
          %s1213 = int_to_ptr.vmem [resolvable:$true] %s1212
          %1218 = dma.vmem_to_hbm [thread:$0]  %s1213, 4096, %s1211, %s1194, 128, 128, 8
        $region48: #{tpu_custom_call.1} parent=35 // pred_fallthru
          _
        // Predicated region
        $region49: #{tpu_custom_call.1} parent=35 // pred_check
          %p1219 = pneg %p160
        $region50: #{tpu_custom_call.1} parent=35 // pred_check_branch
          %1221 = sbr.rel (%p1219) target = $region52
        $region51: #{tpu_custom_call.1} parent=35 // pred_region
          %s1222 = smul.u32 32, %s27
          %s1224 = ssub.s32 4096, 4096
          %1225 = vsyncadd %s1199, %s1224
          %s1226 = smul.addr %s1222, 128
          %s1227 = scalar_lea.hbm %s5, %s1226
          %s1228 = sshll.u32 %s1202, 4
          %s1229 = int_to_ptr.vmem [resolvable:$true] %s1228
          %1234 = dma.vmem_to_hbm [thread:$0]  %s1229, 4096, %s1227, %s1199, 128, 128, 8
        $region52: #{tpu_custom_call.1} parent=35 // pred_fallthru
          _
      $region36: #{tpu_custom_call.1} parent=5 // pred_fallthru
        _
      %p1235 = scmp.le.s32.totalorder 2, %s22
      // Predicated region
      $region53: #{tpu_custom_call.1} parent=5 // pred_check
        %p1236 = pneg %p1235
      $region54: #{tpu_custom_call.1} parent=5 // pred_check_branch
        %1238 = sbr.rel (%p1236) target = $region56
      $region55: #{tpu_custom_call.1} parent=5 // pred_region
        %s1239 = ssub.s32 %s22, 2
        // Predicated region
        $region57: #{tpu_custom_call.1} parent=55 // pred_check
          %p1240 = pneg %p140
        $region58: #{tpu_custom_call.1} parent=55 // pred_check_branch
          %1242 = sbr.rel (%p1240) target = $region60
        $region59: #{tpu_custom_call.1} parent=55 // pred_region
          %s1243 = sand.u32 %s125, 1
          %s1244 = scalar_lea.sflag [#allocation4], %s1243
          %s1245 = sand.u32 %s125, 1
          %s1246 = smul.addr %s1245, 256
          %s1247 = scalar_lea.vmem [#allocation7], %s1246
          %1248 = dma.done %s1244, 4096
        $region60: #{tpu_custom_call.1} parent=55 // pred_fallthru
          _
        // Predicated region
        $region61: #{tpu_custom_call.1} parent=55 // pred_check
          %p1249 = pneg %p166
        $region62: #{tpu_custom_call.1} parent=55 // pred_check_branch
          %1251 = sbr.rel (%p1249) target = $region64
        $region63: #{tpu_custom_call.1} parent=55 // pred_region
          %s1252 = sand.u32 %s151, 1
          %s1253 = scalar_lea.sflag [#allocation9], %s1252
          %s1254 = sand.u32 %s151, 1
          %s1255 = smul.addr %s1254, 256
          %s1256 = scalar_lea.vmem [#allocation8], %s1255
          %1257 = dma.done %s1253, 4096
        $region64: #{tpu_custom_call.1} parent=55 // pred_fallthru
          _
      $region56: #{tpu_custom_call.1} parent=5 // pred_fallthru
        _
    $region6: #{tpu_custom_call.1} parent=1 // loop_footer
      %s26 = sadd.s32 1, %s22
    $region7: #{tpu_custom_call.1} parent=1 // loop_footer_branch
      %21 = sbr.rel target = $region3
    $region8: #{tpu_custom_call.1} parent=1 // loop_exit
      _
    %1258 = vsyncpa [#allocation3], 1
    %s1259 = scalar_lea.sflag [#allocation3], 1
    %1260 = vsyncpa %s1259, 1
    %1261 = vsyncpa [#allocation6], 1
    %1262 = vsyncpa [#allocation4], 1
    %s1263 = scalar_lea.sflag [#allocation4], 1
    %1264 = vsyncpa %s1263, 1
    %1265 = vsyncpa [#allocation9], 1
    %s1266 = scalar_lea.sflag [#allocation9], 1
    %1267 = vsyncpa %s1266, 1

</llo_original>
